<compile_context>
chip_gen: v7x
topology: tpu7x:2x2x1
jax: 0.10.0
libtpu: 0.0.40
codegen_flags: <defaults>
</compile_context>

<pallas_src>
import jax
import jax.numpy as jnp
from jax.experimental import pallas as pl
from jax.experimental.pallas import tpu as pltpu


# ----------------------------------------------------------------------------
# Fused Pallas kernel: chain of (x @ w_eff) + b -> ReLU, all in one body.
# ----------------------------------------------------------------------------
def _make_fused_mlp_kernel(n_layers):
    """Kernel signature: (x, w1, b1, ..., wN, bN, out) — all whole-array VMEM refs."""

    def kernel(x_ref, *rest):
        o_ref = rest[-1]
        wbs = rest[:-1]
        h = x_ref[...]                                   # (B, D0) f32
        for i in range(n_layers):
            w = wbs[2 * i][...]                          # (Din, Dout) bf16, scale pre-folded
            b = wbs[2 * i + 1][...]                      # (1, Dout) f32
            y = jnp.dot(h.astype(w.dtype), w,            # bf16 MXU, f32 accumulate
                        preferred_element_type=jnp.float32)
            h = jnp.maximum(y + b, 0.0)                  # bias + ReLU, f32 epilogue
            # Dropout: identity at inference (no-op).
        o_ref[...] = h.astype(o_ref.dtype)

    return kernel


def vfcnet_fused_pallas(femb, weights, biases):
    """Fused VFCNet forward: femb [B, dims[0]] -> [B, dims[-1]] in one gridless pallas_call."""
    B, d0 = femb.shape
    n_layers = len(weights)
    assert len(biases) == n_layers
    d_out = weights[-1].shape[1]

    vmem = pltpu.MemorySpace.VMEM
    in_specs = [pl.BlockSpec(memory_space=vmem)]
    args = [femb]
    flops = 0
    bytes_accessed = femb.size * femb.dtype.itemsize
    for w, b in zip(weights, biases):
        din, dout = w.shape
        b2 = b.reshape(1, dout)
        in_specs.append(pl.BlockSpec(memory_space=vmem))
        in_specs.append(pl.BlockSpec(memory_space=vmem))
        args.append(w)
        args.append(b2)
        flops += 2 * B * din * dout
        bytes_accessed += w.size * w.dtype.itemsize + b2.size * b2.dtype.itemsize
    bytes_accessed += B * d_out * femb.dtype.itemsize

    return pl.pallas_call(
        _make_fused_mlp_kernel(n_layers),
        out_shape=jax.ShapeDtypeStruct((B, d_out), femb.dtype),
        in_specs=in_specs,
        out_specs=pl.BlockSpec(memory_space=vmem),
        cost_estimate=pl.CostEstimate(
            flops=flops, transcendentals=0, bytes_accessed=bytes_accessed),
    )(*args)


# ----------------------------------------------------------------------------
# Parameter construction (weight_norm parametrization) + one-time folding.
# ----------------------------------------------------------------------------
def init_vfcnet_params(key, dims, inter_layers_num):
    """weight_norm(dim=None) parametrization: store (v, g, b) per Linear layer."""
    params = []
    n_layers = inter_layers_num - 1
    keys = jax.random.split(key, 2 * n_layers)
    for i in range(n_layers):
        din, dout = dims[i], dims[i + 1]
        v = jax.random.normal(keys[2 * i], (din, dout), jnp.float32) * 0.05
        # g initialized to ||v||_F * 1.25 so weight_norm is non-trivial.
        g = jnp.sqrt(jnp.sum(v * v)) * 1.25
        b = jax.random.normal(keys[2 * i + 1], (dout,), jnp.float32) * 0.01
        params.append({"v": v, "g": g, "b": b})
    return params


def prepare_inference_params(params):
    """Fold the weight-norm scale ONCE into the stored weight (static inference
    weights): w_eff = (g / ||v||_F) * v, cast to bf16 for the MXU."""
    weights, biases = [], []
    for p in params:
        scale = p["g"] / jnp.sqrt(jnp.sum(p["v"] * p["v"]))
        weights.append((scale * p["v"]).astype(jnp.bfloat16))
        biases.append(p["b"].astype(jnp.float32))
    return weights, biases


def vfcnet_forward(prepared, femb):
    weights, biases = prepared
    return vfcnet_fused_pallas(femb, weights, biases)


# ----------------------------------------------------------------------------
# Reference (pure jnp, f32) recomputing weight_norm the PyTorch way.
# ----------------------------------------------------------------------------
def vfcnet_reference(params, femb):
    x = femb
    for layer in params:
        v, g, b = layer["v"], layer["g"], layer["b"]
        w_eff = (g / jnp.sqrt(jnp.sum(v * v))) * v
        x = jnp.maximum(x @ w_eff + b, 0.0)
    return x


if __name__ == "__main__":
    # VFCNet(dims=[32, 64, 128], inter_layers_num=3, dropout=0.2,
    #        norm='weight', act='ReLU')  -> 2 fused (Linear + ReLU) layers.
    dims = [32, 64, 128]
    inter_layers_num = 3
    batch = 8

    key = jax.random.PRNGKey(0)
    key_params, key_x = jax.random.split(key)
    params = init_vfcnet_params(key_params, dims, inter_layers_num)
    femb = jax.random.normal(key_x, (batch, dims[0]), jnp.float32)

    prepared = prepare_inference_params(params)
    out = vfcnet_forward(prepared, femb)
    out = jax.block_until_ready(out)

    ref = vfcnet_reference(params, femb)
    assert out.shape == (batch, dims[-1])
    # bf16 weights -> relaxed tolerance vs the f32 reference.
    assert jnp.allclose(out, ref, atol=2e-2, rtol=2e-2), "mismatch vs reference"

    print("KERNEL_OK")
</pallas_src>

<mosaic_0001>
module attributes {stable_mosaic.version = 11 : i64} {
  func.func @kernel(%arg0: memref<8x32xf32, #tpu.memory_space<vmem>>, %arg1: memref<32x64xbf16, #tpu.memory_space<vmem>>, %arg2: memref<1x64xf32, #tpu.memory_space<vmem>>, %arg3: memref<64x128xbf16, #tpu.memory_space<vmem>>, %arg4: memref<1x128xf32, #tpu.memory_space<vmem>>, %arg5: memref<8x128xf32, #tpu.memory_space<vmem>>) attributes {dimension_semantics = [], scalar_prefetch = 0 : i64, scratch_operands = 0 : i64, tpu.core_type = #tpu.core_type<tc>} {
    %c0 = arith.constant 0 : index
    %c0_0 = arith.constant 0 : index
    %0 = vector.load %arg0[%c0, %c0_0] : memref<8x32xf32, #tpu.memory_space<vmem>>, vector<8x32xf32>
    %c0_1 = arith.constant 0 : index
    %c0_2 = arith.constant 0 : index
    %1 = vector.load %arg1[%c0_1, %c0_2] : memref<32x64xbf16, #tpu.memory_space<vmem>>, vector<32x64xbf16>
    %c0_3 = arith.constant 0 : index
    %c0_4 = arith.constant 0 : index
    %2 = vector.load %arg2[%c0_3, %c0_4] : memref<1x64xf32, #tpu.memory_space<vmem>>, vector<1x64xf32>
    %3 = arith.truncf %0 : vector<8x32xf32> to vector<8x32xbf16>
    %cst = arith.constant dense<0.000000e+00> : vector<8x64xf32>
    %4 = tpu.matmul %3, %1, %cst {dimension_numbers = #tpu.dot_dimension_numbers<[1], [0], [0], [1], [0, 0, 1, 1], [], []>} : vector<8x32xbf16>, vector<32x64xbf16>, vector<8x64xf32> -> vector<8x64xf32>
    %5 = vector.broadcast %2 : vector<1x64xf32> to vector<8x64xf32>
    %6 = arith.addf %4, %5 : vector<8x64xf32>
    %cst_5 = arith.constant 0.000000e+00 : f32
    %7 = vector.broadcast %cst_5 : f32 to vector<8x64xf32>
    %8 = arith.maximumf %6, %7 : vector<8x64xf32>
    %c0_6 = arith.constant 0 : index
    %c0_7 = arith.constant 0 : index
    %9 = vector.load %arg3[%c0_6, %c0_7] : memref<64x128xbf16, #tpu.memory_space<vmem>>, vector<64x128xbf16>
    %c0_8 = arith.constant 0 : index
    %c0_9 = arith.constant 0 : index
    %10 = vector.load %arg4[%c0_8, %c0_9] : memref<1x128xf32, #tpu.memory_space<vmem>>, vector<1x128xf32>
    %11 = arith.truncf %8 : vector<8x64xf32> to vector<8x64xbf16>
    %cst_10 = arith.constant dense<0.000000e+00> : vector<8x128xf32>
    %12 = tpu.matmul %11, %9, %cst_10 {dimension_numbers = #tpu.dot_dimension_numbers<[1], [0], [0], [1], [0, 0, 1, 1], [], []>} : vector<8x64xbf16>, vector<64x128xbf16>, vector<8x128xf32> -> vector<8x128xf32>
    %13 = vector.broadcast %10 : vector<1x128xf32> to vector<8x128xf32>
    %14 = arith.addf %12, %13 : vector<8x128xf32>
    %cst_11 = arith.constant 0.000000e+00 : f32
    %15 = vector.broadcast %cst_11 : f32 to vector<8x128xf32>
    %16 = arith.maximumf %14, %15 : vector<8x128xf32>
    %c0_12 = arith.constant 0 : index
    %c0_13 = arith.constant 0 : index
    %17 = vector.load %arg5[%c0_12, %c0_13] : memref<8x128xf32, #tpu.memory_space<vmem>>, vector<8x128xf32>
    tpu.vector_store %arg5[%c0_12, %c0_13], %16 {strides = array<i32>} : memref<8x128xf32, #tpu.memory_space<vmem>>, vector<8x128xf32>,
    return
  }
}

</mosaic_0001>

<llo_original>
// kernel: tpu_custom_call.1
$region0: #{tpu_custom_call.1}
  #allocation0 [shape = 'u32[]', space=smem, size = 0x4, offset = 0x4, fixed_abs, tag = 'smem constant byte address 0x4 - core index']
  #allocation1 [shape = 'u32[144,128]{1,0:T(1,128)}', space=vmem, size = 0x12000, scoped, tag = 'internal scratch']
  %s0 = inlined_call_operand.hbm [shape: f32[8,32], index: 0, kind: input, shape index: {}]
  %s1 = inlined_call_operand.hbm [shape: bf16[32,64], index: 1, kind: input, shape index: {}]
  %s2 = inlined_call_operand.vmem [shape: f32[1,64], index: 2, kind: input, shape index: {}]
  %s3 = inlined_call_operand.hbm [shape: bf16[64,128], index: 3, kind: input, shape index: {}]
  %s4 = inlined_call_operand.vmem [shape: f32[1,128], index: 4, kind: input, shape index: {}]
  %s5 = inlined_call_operand.hbm [shape: f32[8,128], index: 5, kind: output, shape index: {}]
  %s6 = sld [smem:[#allocation0]]
  $region42: #{tpu_custom_call.1} parent=0
    _
  %s8 = ssub.s32 1, %s6
  %s9 = scalar_select 0, %s8, %s6
  $region1: #{tpu_custom_call.1} parent=0
    #allocation2 [shape = 'u8[4096]{0}', space=vmem, size = 0x1000, scoped, tag = 'input window, operand 0, single buffered']
    #allocation3 [shape = 's32[1]{0}', space=sflag, size = 0x4, scoped, tag = 'scoped memory for tpu_custom_call.1']
    #allocation4 [shape = 's32[1]{0}', space=sflag, size = 0x4, scoped, tag = 'scoped memory for tpu_custom_call.1']
    #allocation5 [shape = 'u8[8192]{0}', space=vmem, size = 0x2000, scoped, tag = 'input window, operand 1, single buffered']
    #allocation6 [shape = 's32[1]{0}', space=sflag, size = 0x4, scoped, tag = 'scoped memory for tpu_custom_call.1']
    #allocation7 [shape = 'u8[16384]{0}', space=vmem, size = 0x4000, scoped, tag = 'input window, operand 3, single buffered']
    #allocation8 [shape = 'u8[4096]{0}', space=vmem, size = 0x1000, scoped, tag = 'output window, operand 0, single buffered']
    %10 = vsyncpa [#allocation3], 0
    %11 = vsyncpa [#allocation6], 0
    %12 = vsyncpa [#allocation4], 0
    // Predicated region
    $region2: #{tpu_custom_call.1} parent=1 // pred_check
      _
    $region3: #{tpu_custom_call.1} parent=1 // pred_check_branch
      %14 = sbr.rel (0) target = $region5
    $region4: #{tpu_custom_call.1} parent=1 // pred_region
      %s16 = ssub.s32 128, 128
      %17 = vsyncadd [#allocation3], %s16
      %s19 = sshll.u32 [#allocation2], 4
      %s20 = int_to_ptr.vmem [resolvable:$true] %s19
      %22 = dma.hbm_to_vmem [thread:$0]  %s0, 128, %s20, [#allocation3]
    $region5: #{tpu_custom_call.1} parent=1 // pred_fallthru
      _
    // Predicated region
    $region6: #{tpu_custom_call.1} parent=1 // pred_check
      _
    $region7: #{tpu_custom_call.1} parent=1 // pred_check_branch
      %24 = sbr.rel (0) target = $region9
    $region8: #{tpu_custom_call.1} parent=1 // pred_region
      %s26 = ssub.s32 256, 256
      %27 = vsyncadd [#allocation6], %s26
      %s28 = sshll.u32 [#allocation5], 4
      %s29 = int_to_ptr.vmem [resolvable:$true] %s28
      %34 = dma.hbm_to_vmem [thread:$0]  %s1, 256, %s29, [#allocation6], 64, 64, 4
    $region9: #{tpu_custom_call.1} parent=1 // pred_fallthru
      _
    // Predicated region
    $region10: #{tpu_custom_call.1} parent=1 // pred_check
      _
    $region11: #{tpu_custom_call.1} parent=1 // pred_check_branch
      %36 = sbr.rel (0) target = $region13
    $region12: #{tpu_custom_call.1} parent=1 // pred_region
      _
    $region13: #{tpu_custom_call.1} parent=1 // pred_fallthru
      _
    // Predicated region
    $region14: #{tpu_custom_call.1} parent=1 // pred_check
      _
    $region15: #{tpu_custom_call.1} parent=1 // pred_check_branch
      %38 = sbr.rel (0) target = $region17
    $region16: #{tpu_custom_call.1} parent=1 // pred_region
      %s40 = ssub.s32 512, 512
      %41 = vsyncadd [#allocation6], %s40
      %s42 = sshll.u32 [#allocation7], 4
      %s43 = int_to_ptr.vmem [resolvable:$true] %s42
      %48 = dma.hbm_to_vmem [thread:$0]  %s3, 512, %s43, [#allocation6], 64, 64, 4
    $region17: #{tpu_custom_call.1} parent=1 // pred_fallthru
      _
    // Predicated region
    $region18: #{tpu_custom_call.1} parent=1 // pred_check
      _
    $region19: #{tpu_custom_call.1} parent=1 // pred_check_branch
      %50 = sbr.rel (0) target = $region21
    $region20: #{tpu_custom_call.1} parent=1 // pred_region
      _
    $region21: #{tpu_custom_call.1} parent=1 // pred_fallthru
      _
    // Predicated region
    $region22: #{tpu_custom_call.1} parent=1 // pred_check
      _
    $region23: #{tpu_custom_call.1} parent=1 // pred_check_branch
      %52 = sbr.rel (0) target = $region25
    $region24: #{tpu_custom_call.1} parent=1 // pred_region
      %53 = dma.done [#allocation3], 128
    $region25: #{tpu_custom_call.1} parent=1 // pred_fallthru
      _
    // Predicated region
    $region26: #{tpu_custom_call.1} parent=1 // pred_check
      _
    $region27: #{tpu_custom_call.1} parent=1 // pred_check_branch
      %55 = sbr.rel (0) target = $region29
    $region28: #{tpu_custom_call.1} parent=1 // pred_region
      %56 = dma.done [#allocation6], 256
    $region29: #{tpu_custom_call.1} parent=1 // pred_fallthru
      _
    // Predicated region
    $region30: #{tpu_custom_call.1} parent=1 // pred_check
      _
    $region31: #{tpu_custom_call.1} parent=1 // pred_check_branch
      %58 = sbr.rel (0) target = $region33
    $region32: #{tpu_custom_call.1} parent=1 // pred_region
      %59 = dma.done [#allocation6], 512
    $region33: #{tpu_custom_call.1} parent=1 // pred_fallthru
      _
    %v61 = vld [vmem:[#allocation2] sm:$0xff]
    %v62 = vld [vmem:[#allocation5] sm:$0xf]
    %v63 = vld [vmem:[#allocation5 + $0x4] sm:$0xf]
    %v64 = vld [vmem:[#allocation5 + $0x8] sm:$0xf]
    %v65 = vld [vmem:[#allocation5 + $0xc] sm:$0xf]
    %v66 = vld [vmem:[%s2] sm:$0x1]
    %v67 = vpack.c.bf16 %v61, %v61
    %v69 = vlaneseq
    %v70 = vshrl.u32 %v69, 7
    %v71 = vsub.s32 0, %v70
    %v72 = vrot.slane %v66, %v71
    %v78 = vunpack.c.l.b16 %v62
    %v79 = vunpack.c.l.b16 %v63
    %v80 = vunpack.c.l.b16 %v64
    %v81 = vunpack.c.l.b16 %v65
    %v82 = vpack.c.b16 %v79, %v78
    %v83 = vpack.c.b16 %v81, %v80
    %vm86 = vcmask 261120
    %v88 = vsel %vm86, %v67, 0
    %90 = vmatprep.subr.bf16.mxu0 0
    %91 = vmatpush1.bf16.msra.mxu0 %v82
    %92 = vmatprep.subr.bf16.mxu0 0
    %93 = vmatpush1.bf16.msra.mxu0 %v83
    %94 = vmatprep.subr.bf16.mxu0 0
    %95 = vmatpush1.bf16.msra.mxu0 0
    %96 = vmatprep.subr.bf16.mxu0 0
    %97 = vmatpush1.bf16.msra.mxu0 0
    %98 = vmatprep.subr.bf16.mxu0 0
    %99 = vmatpush1.bf16.msra.mxu0 0
    %100 = vmatprep.subr.bf16.mxu0 0
    %101 = vmatpush1.bf16.msra.mxu0 0
    %102 = vmatprep.subr.bf16.mxu0 0
    %103 = vmatpush1.bf16.msra.mxu0 0
    %104 = vmatprep.subr.bf16.mxu0 0
    %105 = vmatpush1.bf16.msra.mxu0 0
    %106 = vmatprep.subr.bf16.mxu0 0
    %107 = vmatpush1.bf16.msra.mxu0 0
    %108 = vmatprep.subr.bf16.mxu0 0
    %109 = vmatpush1.bf16.msra.mxu0 0
    %110 = vmatprep.subr.bf16.mxu0 0
    %111 = vmatpush1.bf16.msra.mxu0 0
    %112 = vmatprep.subr.bf16.mxu0 0
    %113 = vmatpush1.bf16.msra.mxu0 0
    %114 = vmatprep.subr.bf16.mxu0 0
    %115 = vmatpush1.bf16.msra.mxu0 0
    %116 = vmatprep.subr.bf16.mxu0 0
    %117 = vmatpush1.bf16.msra.mxu0 0
    %118 = vmatprep.subr.bf16.mxu0 0
    %119 = vmatpush1.bf16.msra.mxu0 0
    %120 = vmatprep.subr.bf16.mxu0 0
    %121 = vmatpush1.bf16.msra.mxu0 0
    %122 = vmatprep.mubr.bf16.mxu0 0
    %123 = vmatmul.mubr.bf16.gmra.mrb[0].mxu0 %v88
    %v124 = vpop.f32.mrb[0].mxu0
    %v125 = vadd.f32 %v72, %v124
    %v126 = vpop.f32.mrb[0].mxu0
    %v127 = vpop.f32.mrb[0].mxu0
    %v128 = vpop.f32.mrb[0].mxu0
    %129 = vdwg.mxu0
    %v130 = vmax.f32 %v125, 0.0
    %v131 = vld [vmem:[#allocation7] sm:$0xf]
    %v132 = vld [vmem:[#allocation7 + $0x4] sm:$0xf]
    %v133 = vld [vmem:[#allocation7 + $0x8] sm:$0xf]
    %v134 = vld [vmem:[#allocation7 + $0xc] sm:$0xf]
    %v135 = vld [vmem:[#allocation7 + $0x10] sm:$0xf]
    %v136 = vld [vmem:[#allocation7 + $0x14] sm:$0xf]
    %v137 = vld [vmem:[#allocation7 + $0x18] sm:$0xf]
    %v138 = vld [vmem:[#allocation7 + $0x1c] sm:$0xf]
    %v139 = vld [vmem:[%s4] sm:$0x1]
    %v140 = vpack.c.bf16 %v130, %v130
    %v142 = vlaneseq
    %v143 = vshrl.u32 %v142, 7
    %v144 = vsub.s32 0, %v143
    %v145 = vrot.slane %v139, %v144
    %v155 = vunpack.c.l.b16 %v131
    %v156 = vunpack.c.l.b16 %v132
    %v157 = vunpack.c.l.b16 %v133
    %v158 = vunpack.c.l.b16 %v134
    %v159 = vunpack.c.l.b16 %v135
    %v160 = vunpack.c.l.b16 %v136
    %v161 = vunpack.c.l.b16 %v137
    %v162 = vunpack.c.l.b16 %v138
    %v163 = vpack.c.b16 %v156, %v155
    %v164 = vpack.c.b16 %v158, %v157
    %v165 = vpack.c.b16 %v160, %v159
    %v166 = vpack.c.b16 %v162, %v161
    %vm171 = vcmask 523264
    %v173 = vsel %vm171, %v140, 0
    %175 = vmatprep.subr.bf16.mxu0 0
    %176 = vmatpush1.bf16.msra.mxu0 %v163
    %177 = vmatprep.subr.bf16.mxu0 0
    %178 = vmatpush1.bf16.msra.mxu0 %v164
    %179 = vmatprep.subr.bf16.mxu0 0
    %180 = vmatpush1.bf16.msra.mxu0 %v165
    %181 = vmatprep.subr.bf16.mxu0 0
    %182 = vmatpush1.bf16.msra.mxu0 %v166
    %183 = vmatprep.subr.bf16.mxu0 0
    %184 = vmatpush1.bf16.msra.mxu0 0
    %185 = vmatprep.subr.bf16.mxu0 0
    %186 = vmatpush1.bf16.msra.mxu0 0
    %187 = vmatprep.subr.bf16.mxu0 0
    %188 = vmatpush1.bf16.msra.mxu0 0
    %189 = vmatprep.subr.bf16.mxu0 0
    %190 = vmatpush1.bf16.msra.mxu0 0
    %191 = vmatprep.subr.bf16.mxu0 0
    %192 = vmatpush1.bf16.msra.mxu0 0
    %193 = vmatprep.subr.bf16.mxu0 0
    %194 = vmatpush1.bf16.msra.mxu0 0
    %195 = vmatprep.subr.bf16.mxu0 0
    %196 = vmatpush1.bf16.msra.mxu0 0
    %197 = vmatprep.subr.bf16.mxu0 0
    %198 = vmatpush1.bf16.msra.mxu0 0
    %199 = vmatprep.subr.bf16.mxu0 0
    %200 = vmatpush1.bf16.msra.mxu0 0
    %201 = vmatprep.subr.bf16.mxu0 0
    %202 = vmatpush1.bf16.msra.mxu0 0
    %203 = vmatprep.subr.bf16.mxu0 0
    %204 = vmatpush1.bf16.msra.mxu0 0
    %205 = vmatprep.subr.bf16.mxu0 0
    %206 = vmatpush1.bf16.msra.mxu0 0
    %207 = vmatprep.mubr.bf16.mxu0 0
    %208 = vmatmul.mubr.bf16.gmra.mrb[0].mxu0 %v173
    %v209 = vpop.f32.mrb[0].mxu0
    %v210 = vadd.f32 %v145, %v209
    %v211 = vpop.f32.mrb[0].mxu0
    %v212 = vpop.f32.mrb[0].mxu0
    %v213 = vpop.f32.mrb[0].mxu0
    %214 = vdwg.mxu0
    %v215 = vmax.f32 %v210, 0.0
    %216 = vst [vmem:[#allocation8] sm:$0xff] %v215
    // Predicated region
    $region34: #{tpu_custom_call.1} parent=1 // pred_check
      _
    $region35: #{tpu_custom_call.1} parent=1 // pred_check_branch
      %218 = sbr.rel (0) target = $region37
    $region36: #{tpu_custom_call.1} parent=1 // pred_region
      %s220 = ssub.s32 128, 128
      %221 = vsyncadd [#allocation4], %s220
      %s223 = sshll.u32 [#allocation8], 4
      %s224 = int_to_ptr.vmem [resolvable:$true] %s223
      %226 = dma.vmem_to_hbm [thread:$0]  %s224, 128, %s5, [#allocation4]
    $region37: #{tpu_custom_call.1} parent=1 // pred_fallthru
      _
    // Predicated region
    $region38: #{tpu_custom_call.1} parent=1 // pred_check
      _
    $region39: #{tpu_custom_call.1} parent=1 // pred_check_branch
      %228 = sbr.rel (0) target = $region41
    $region40: #{tpu_custom_call.1} parent=1 // pred_region
      %229 = dma.done [#allocation4], 128
    $region41: #{tpu_custom_call.1} parent=1 // pred_fallthru
      _
    %230 = vsyncpa [#allocation3], 1
    %231 = vsyncpa [#allocation6], 1
    %232 = vsyncpa [#allocation4], 1

</llo_original>
